<compile_context>
chip_gen: v7x
topology: tpu7x:2x2x1
jax: 0.10.0
libtpu: 0.0.40
codegen_flags: <defaults>
</compile_context>

<pallas_src>
import functools

import jax
import jax.numpy as jnp
from jax.experimental import pallas as pl
from jax.experimental.pallas import tpu as pltpu


EPSILON = 1e-7


def _round_up(n: int, m: int) -> int:
    return ((n + m - 1) // m) * m


def _cheby_kan_kernel(x_ref, w_ref, o_ref, *, degree: int, input_dim: int,
                      output_dim: int, dot_dtype, fused: bool):
    # x_ref: (bb, input_dim)                   current batch tile
    # w_ref: ((degree+1)*input_dim, o_pad)     fused coefficient matrix (degree-major rows)
    # o_ref: (bb, output_dim)                  unpadded output tile
    t = jnp.tanh(x_ref[...].astype(jnp.float32))
    t = jnp.clip(t, -1.0 + EPSILON, 1.0 - EPSILON)

    # Chebyshev recurrence, statically unrolled (degree is small & static):
    # T_d(t) == cos(d * acos(t)) on [-1, 1].
    polys = [jnp.ones_like(t)]
    if degree >= 1:
        polys.append(t)
    for _ in range(2, degree + 1):
        polys.append(2.0 * t * polys[-1] - polys[-2])

    if fused:
        # input_dim % 128 == 0: lane-aligned concat, single big matmul.
        basis = jnp.concatenate([p.astype(dot_dtype) for p in polys], axis=-1)
        acc = jnp.dot(basis, w_ref[...], preferred_element_type=jnp.float32)
    else:
        # Avoid a non-128-aligned lane concat: accumulate degree+1 small
        # matmuls against static row-slices of the fused weight matrix.
        acc = jnp.dot(polys[0].astype(dot_dtype),
                      w_ref[pl.ds(0, input_dim), :],
                      preferred_element_type=jnp.float32)
        for d in range(1, degree + 1):
            acc += jnp.dot(polys[d].astype(dot_dtype),
                           w_ref[pl.ds(d * input_dim, input_dim), :],
                           preferred_element_type=jnp.float32)

    # Store only the valid output columns (o_pad is matmul-internal only).
    o_ref[...] = acc[:, :output_dim].astype(o_ref.dtype)


def prepare_cheby_weights(cheby_coeffs, dot_dtype=jnp.bfloat16):
    """One-time weight prep: (I, O, D+1) -> ((D+1)*I, O_pad) in dot_dtype.

    Degree-major rows to match the kernel's basis layout; output columns padded
    to a lane-dense multiple of 128 (matmul-internal only).
    """
    input_dim, output_dim, deg_p1 = cheby_coeffs.shape
    o_pad = _round_up(output_dim, 128)
    w = jnp.transpose(cheby_coeffs, (2, 0, 1)).reshape(deg_p1 * input_dim, output_dim)
    if o_pad != output_dim:
        w = jnp.pad(w, ((0, 0), (0, o_pad - output_dim)))
    return w.astype(dot_dtype)


def cheby_kan_apply(x, w_prepared, *, input_dim: int, output_dim: int, degree: int,
                    block_b_max: int = 1024, out_dtype=None):
    """Forward with precomputed weights. x: (..., input_dim) -> (B, output_dim)."""
    K, o_pad = w_prepared.shape
    assert K == (degree + 1) * input_dim, (K, degree, input_dim)

    x2d = x.reshape(-1, input_dim)
    B = x2d.shape[0]
    if out_dtype is None:
        out_dtype = x.dtype

    # Batch tile: multiple of 16 (bf16 sublane packing), as large as possible
    # up to block_b_max (kernel is HBM/overhead bound; VMEM has huge headroom).
    bb = min(block_b_max, _round_up(B, 16))
    grid_b = pl.cdiv(B, bb)          # ragged last block handled by Pallas

    fused = (input_dim % 128 == 0)
    dot_dtype = w_prepared.dtype

    kernel = functools.partial(
        _cheby_kan_kernel, degree=degree, input_dim=input_dim,
        output_dim=output_dim, dot_dtype=dot_dtype, fused=fused)

    # Rough resident-VMEM estimate: double-buffered x/out tiles, whole weight
    # block (double-buffered worst case), basis + f32 accumulator.
    itemsize_w = jnp.dtype(dot_dtype).itemsize
    est_bytes = (2 * bb * input_dim * 4
                 + 2 * bb * output_dim * jnp.dtype(out_dtype).itemsize
                 + 2 * K * o_pad * itemsize_w
                 + bb * K * itemsize_w
                 + bb * o_pad * 4)
    compiler_kwargs = dict(dimension_semantics=("parallel",))
    if est_bytes > 30 * 1024 * 1024:
        compiler_kwargs["vmem_limit_bytes"] = min(int(est_bytes * 3 // 2),
                                                  48 * 1024 * 1024)

    out = pl.pallas_call(
        kernel,
        out_shape=jax.ShapeDtypeStruct((B, output_dim), out_dtype),
        grid_spec=pltpu.PrefetchScalarGridSpec(
            num_scalar_prefetch=0,
            grid=(grid_b,),
            in_specs=[
                pl.BlockSpec((bb, input_dim), lambda i: (i, 0)),
                pl.BlockSpec((K, o_pad), lambda i: (0, 0)),   # constant block
            ],
            out_specs=pl.BlockSpec((bb, output_dim), lambda i: (i, 0)),
        ),
        compiler_params=pltpu.CompilerParams(**compiler_kwargs),
    )(x2d, w_prepared)
    return out


def cheby_kan_layer(x, cheby_coeffs, *, block_b_max: int = 1024,
                    dot_dtype=jnp.bfloat16, out_dtype=None):
    """Convenience wrapper: prepares weights per call (prefer prepare+apply)."""
    input_dim, output_dim, deg_p1 = cheby_coeffs.shape
    w = prepare_cheby_weights(cheby_coeffs, dot_dtype=dot_dtype)
    return cheby_kan_apply(x, w, input_dim=input_dim, output_dim=output_dim,
                           degree=deg_p1 - 1, block_b_max=block_b_max,
                           out_dtype=out_dtype)


def _reference(x, cheby_coeffs):
    input_dim, output_dim, deg_p1 = cheby_coeffs.shape
    xt = jnp.tanh(x.reshape(-1, input_dim)).astype(jnp.float32)
    theta = jnp.arccos(jnp.clip(xt, -1.0 + EPSILON, 1.0 - EPSILON))
    arange = jnp.arange(deg_p1, dtype=jnp.float32)
    basis = jnp.cos(theta[:, :, None] * arange[None, None, :])        # (B, I, D+1)
    return jnp.einsum("bid,iod->bo", basis, cheby_coeffs.astype(jnp.float32))


if __name__ == "__main__":
    input_dim, output_dim, degree = 32, 16, 3
    batch, seq = 2, 8   # leading dims flattened, as in the PyTorch view(-1, ...)

    key = jax.random.PRNGKey(0)
    kx, kw, kx2 = jax.random.split(key, 3)

    x = jax.random.normal(kx, (batch, seq, input_dim), dtype=jnp.float32)

    # nn.init.normal_(mean=0, std=1/(input_dim*(degree+1)))
    std = 1.0 / (input_dim * (degree + 1))
    cheby_coeffs = std * jax.random.normal(
        kw, (input_dim, output_dim, degree + 1), dtype=jnp.float32
    )

    y_ref = _reference(x, cheby_coeffs)

    # Exact-algorithm check: f32 matmul operands (tight tolerance).
    w_f32 = prepare_cheby_weights(cheby_coeffs, dot_dtype=jnp.float32)
    y_f32 = cheby_kan_apply(x, w_f32, input_dim=input_dim,
                            output_dim=output_dim, degree=degree)
    y_f32 = jax.block_until_ready(y_f32)
    assert y_f32.shape == (batch * seq, output_dim), y_f32.shape
    assert jnp.allclose(y_f32, y_ref, atol=1e-5, rtol=1e-5), \
        float(jnp.max(jnp.abs(y_f32 - y_ref)))

    # Fast path: bf16 matmul operands, f32 accumulation (looser tolerance).
    w_bf16 = prepare_cheby_weights(cheby_coeffs)        # hoisted weight prep
    y = cheby_kan_apply(x, w_bf16, input_dim=input_dim,
                        output_dim=output_dim, degree=degree)
    y = jax.block_until_ready(y)
    assert y.shape == (batch * seq, output_dim), y.shape
    assert jnp.allclose(y, y_ref, atol=1e-3, rtol=2e-2), \
        float(jnp.max(jnp.abs(y - y_ref)))

    # Ragged-grid check: B not a multiple of the batch tile (partial last block).
    x_rag = jax.random.normal(kx2, (5, seq, input_dim), dtype=jnp.float32)  # B=40
    y_rag = cheby_kan_apply(x_rag, w_f32, input_dim=input_dim,
                            output_dim=output_dim, degree=degree,
                            block_b_max=16)             # grid of 3, last block partial
    y_rag = jax.block_until_ready(y_rag)
    y_rag_ref = _reference(x_rag, cheby_coeffs)
    assert y_rag.shape == (5 * seq, output_dim), y_rag.shape
    assert jnp.allclose(y_rag, y_rag_ref, atol=1e-5, rtol=1e-5), \
        float(jnp.max(jnp.abs(y_rag - y_rag_ref)))

    print("KERNEL_OK")
</pallas_src>

<mosaic_0001>
module attributes {stable_mosaic.version = 11 : i64} {
  func.func @_cheby_kan_kernel(%arg0: i32, %arg1: memref<16x32xf32, #tpu.memory_space<vmem>>, %arg2: memref<128x128xf32, #tpu.memory_space<vmem>>, %arg3: memref<16x16xf32, #tpu.memory_space<vmem>>) attributes {dimension_semantics = [#tpu.dimension_semantics<parallel>], iteration_bounds = array<i64: 1>, scalar_prefetch = 0 : i64, scratch_operands = 0 : i64, tpu.core_type = #tpu.core_type<tc>, window_params = [{transform_indices = @transform_0, window_bounds = array<i64: 16, 32>}, {pipeline_mode = #tpu.pipeline_mode<synchronous>, transform_indices = @transform_1, window_bounds = array<i64: 128, 128>}, {transform_indices = @transform_2, window_bounds = array<i64: 16, 16>}]} {
    %c0 = arith.constant 0 : index
    %c0_0 = arith.constant 0 : index
    %0 = vector.load %arg1[%c0, %c0_0] : memref<16x32xf32, #tpu.memory_space<vmem>>, vector<16x32xf32>
    %1 = math.tanh %0 : vector<16x32xf32>
    %cst = arith.constant -0.99999988 : f32
    %cst_1 = arith.constant 0.99999988 : f32
    %2 = vector.broadcast %cst : f32 to vector<16x32xf32>
    %3 = arith.maximumf %2, %1 : vector<16x32xf32>
    %4 = vector.broadcast %cst_1 : f32 to vector<16x32xf32>
    %5 = arith.minimumf %4, %3 : vector<16x32xf32>
    %cst_2 = arith.constant 1.000000e+00 : f32
    %6 = vector.broadcast %cst_2 : f32 to vector<16x32xf32>
    %cst_3 = arith.constant 2.000000e+00 : f32
    %7 = vector.broadcast %cst_3 : f32 to vector<16x32xf32>
    %8 = arith.mulf %7, %5 : vector<16x32xf32>
    %9 = arith.mulf %8, %5 : vector<16x32xf32>
    %10 = arith.subf %9, %6 : vector<16x32xf32>
    %cst_4 = arith.constant 2.000000e+00 : f32
    %11 = vector.broadcast %cst_4 : f32 to vector<16x32xf32>
    %12 = arith.mulf %11, %5 : vector<16x32xf32>
    %13 = arith.mulf %12, %10 : vector<16x32xf32>
    %14 = arith.subf %13, %5 : vector<16x32xf32>
    %c0_5 = arith.constant 0 : index
    %c0_6 = arith.constant 0 : index
    %15 = vector.load %arg2[%c0_5, %c0_6] : memref<128x128xf32, #tpu.memory_space<vmem>>, vector<32x128xf32>
    %cst_7 = arith.constant dense<0.000000e+00> : vector<16x128xf32>
    %16 = tpu.matmul %6, %15, %cst_7 {dimension_numbers = #tpu.dot_dimension_numbers<[1], [0], [0], [1], [0, 0, 1, 1], [], []>} : vector<16x32xf32>, vector<32x128xf32>, vector<16x128xf32> -> vector<16x128xf32>
    %c32 = arith.constant 32 : index
    %c0_8 = arith.constant 0 : index
    %17 = vector.load %arg2[%c32, %c0_8] : memref<128x128xf32, #tpu.memory_space<vmem>>, vector<32x128xf32>
    %cst_9 = arith.constant dense<0.000000e+00> : vector<16x128xf32>
    %18 = tpu.matmul %5, %17, %cst_9 {dimension_numbers = #tpu.dot_dimension_numbers<[1], [0], [0], [1], [0, 0, 1, 1], [], []>} : vector<16x32xf32>, vector<32x128xf32>, vector<16x128xf32> -> vector<16x128xf32>
    %19 = arith.addf %16, %18 : vector<16x128xf32>
    %c64 = arith.constant 64 : index
    %c0_10 = arith.constant 0 : index
    %20 = vector.load %arg2[%c64, %c0_10] : memref<128x128xf32, #tpu.memory_space<vmem>>, vector<32x128xf32>
    %cst_11 = arith.constant dense<0.000000e+00> : vector<16x128xf32>
    %21 = tpu.matmul %10, %20, %cst_11 {dimension_numbers = #tpu.dot_dimension_numbers<[1], [0], [0], [1], [0, 0, 1, 1], [], []>} : vector<16x32xf32>, vector<32x128xf32>, vector<16x128xf32> -> vector<16x128xf32>
    %22 = arith.addf %19, %21 : vector<16x128xf32>
    %c96 = arith.constant 96 : index
    %c0_12 = arith.constant 0 : index
    %23 = vector.load %arg2[%c96, %c0_12] : memref<128x128xf32, #tpu.memory_space<vmem>>, vector<32x128xf32>
    %cst_13 = arith.constant dense<0.000000e+00> : vector<16x128xf32>
    %24 = tpu.matmul %14, %23, %cst_13 {dimension_numbers = #tpu.dot_dimension_numbers<[1], [0], [0], [1], [0, 0, 1, 1], [], []>} : vector<16x32xf32>, vector<32x128xf32>, vector<16x128xf32> -> vector<16x128xf32>
    %25 = arith.addf %22, %24 : vector<16x128xf32>
    %26 = vector.extract_strided_slice %25 {offsets = [0, 0], sizes = [16, 16], strides = [1, 1]} : vector<16x128xf32> to vector<16x16xf32>
    %c0_14 = arith.constant 0 : index
    %c0_15 = arith.constant 0 : index
    %27 = vector.load %arg3[%c0_14, %c0_15] : memref<16x16xf32, #tpu.memory_space<vmem>>, vector<16x16xf32>
    tpu.vector_store %arg3[%c0_14, %c0_15], %26 {strides = array<i32>} : memref<16x16xf32, #tpu.memory_space<vmem>>, vector<16x16xf32>,
    return
  }
  func.func @transform_0(%arg0: i32) -> (i32, i32) {
    %c0_i32 = arith.constant 0 : i32
    %c0_i32_0 = arith.constant 0 : i32
    return %arg0, %c0_i32 : i32, i32
  }
  func.func @transform_1(%arg0: i32) -> (i32, i32) {
    %c0_i32 = arith.constant 0 : i32
    %c0_i32_0 = arith.constant 0 : i32
    %c0_i32_1 = arith.constant 0 : i32
    return %c0_i32, %c0_i32_0 : i32, i32
  }
  func.func @transform_2(%arg0: i32) -> (i32, i32) {
    %c0_i32 = arith.constant 0 : i32
    %c0_i32_0 = arith.constant 0 : i32
    return %arg0, %c0_i32 : i32, i32
  }
}

</mosaic_0001>

<llo_original>
// kernel: tpu_custom_call.1
$region0: #{tpu_custom_call.1}
  #allocation0 [shape = 'u32[]', space=smem, size = 0x4, offset = 0x4, fixed_abs, tag = 'smem constant byte address 0x4 - core index']
  #allocation1 [shape = 'u32[144,128]{1,0:T(1,128)}', space=vmem, size = 0x12000, scoped, tag = 'internal scratch']
  %s0 = inlined_call_operand.hbm [shape: f32[16,32], index: 0, kind: input, shape index: {}]
  %s1 = inlined_call_operand.hbm [shape: f32[128,128], index: 1, kind: input, shape index: {}]
  %s2 = inlined_call_operand.hbm [shape: f32[16,16], index: 2, kind: output, shape index: {}]
  %s3 = sld [smem:[#allocation0]]
  $region26: #{tpu_custom_call.1} parent=0
    _
  %s5 = ssub.s32 1, %s3
  %s6 = scalar_select 0, %s5, %s3
  $region1: #{tpu_custom_call.1} parent=0
    #allocation2 [shape = 'u8[8192]{0}', space=vmem, size = 0x2000, scoped, tag = 'input window, operand 0, single buffered']
    #allocation3 [shape = 's32[1]{0}', space=sflag, size = 0x4, scoped, tag = 'scoped memory for tpu_custom_call.1']
    #allocation4 [shape = 's32[1]{0}', space=sflag, size = 0x4, scoped, tag = 'scoped memory for tpu_custom_call.1']
    #allocation5 [shape = 'u8[65536]{0}', space=vmem, size = 0x10000, scoped, tag = 'input window, operand 1, single buffered']
    #allocation6 [shape = 's32[1]{0}', space=sflag, size = 0x4, scoped, tag = 'scoped memory for tpu_custom_call.1']
    #allocation7 [shape = 'u8[8192]{0}', space=vmem, size = 0x2000, scoped, tag = 'output window, operand 0, single buffered']
    %7 = vsyncpa [#allocation3], 0
    %8 = vsyncpa [#allocation6], 0
    %9 = vsyncpa [#allocation4], 0
    // Predicated region
    $region2: #{tpu_custom_call.1} parent=1 // pred_check
      _
    $region3: #{tpu_custom_call.1} parent=1 // pred_check_branch
      %11 = sbr.rel (0) target = $region5
    $region4: #{tpu_custom_call.1} parent=1 // pred_region
      %s13 = ssub.s32 256, 256
      %14 = vsyncadd [#allocation3], %s13
      %s15 = sshll.u32 [#allocation2], 4
      %s16 = int_to_ptr.vmem [resolvable:$true] %s15
      %21 = dma.hbm_to_vmem [thread:$0]  %s0, 256, %s16, [#allocation3], 128, 128, 8
    $region5: #{tpu_custom_call.1} parent=1 // pred_fallthru
      _
    // Predicated region
    $region6: #{tpu_custom_call.1} parent=1 // pred_check
      _
    $region7: #{tpu_custom_call.1} parent=1 // pred_check_branch
      %23 = sbr.rel (0) target = $region9
    $region8: #{tpu_custom_call.1} parent=1 // pred_region
      %s25 = ssub.s32 2048, 2048
      %26 = vsyncadd [#allocation6], %s25
      %s27 = sshll.u32 [#allocation5], 4
      %s28 = int_to_ptr.vmem [resolvable:$true] %s27
      %33 = dma.hbm_to_vmem [thread:$0]  %s1, 2048, %s28, [#allocation6], 128, 128, 8
    $region9: #{tpu_custom_call.1} parent=1 // pred_fallthru
      _
    // Predicated region
    $region10: #{tpu_custom_call.1} parent=1 // pred_check
      _
    $region11: #{tpu_custom_call.1} parent=1 // pred_check_branch
      %35 = sbr.rel (0) target = $region13
    $region12: #{tpu_custom_call.1} parent=1 // pred_region
      %36 = dma.done [#allocation3], 256
    $region13: #{tpu_custom_call.1} parent=1 // pred_fallthru
      _
    // Predicated region
    $region14: #{tpu_custom_call.1} parent=1 // pred_check
      _
    $region15: #{tpu_custom_call.1} parent=1 // pred_check_branch
      %38 = sbr.rel (0) target = $region17
    $region16: #{tpu_custom_call.1} parent=1 // pred_region
      %39 = dma.done [#allocation6], 2048
    $region17: #{tpu_custom_call.1} parent=1 // pred_fallthru
      _
    %v40 = vld [vmem:[#allocation2] sm:$0xff]
    %v41 = vld [vmem:[#allocation2 + $0x8] sm:$0xff]
    %v42 = vtanh.pop %v40
    %v43 = vtanh.pop %v41
    %v44 = vmax.f32 %v42, -0.9999999
    %v45 = vmax.f32 %v43, -0.9999999
    %v46 = vmin.f32 %v44, 0.9999999
    %v47 = vmin.f32 %v45, 0.9999999
    %v48 = vmul.f32 %v46, 2.0
    %v49 = vmul.f32 %v47, 2.0
    %v50 = vmul.f32 %v48, %v46
    %v51 = vmul.f32 %v49, %v47
    %v52 = vsub.f32 %v50, 1.0
    %v53 = vsub.f32 %v51, 1.0
    %v54 = vmul.f32 %v48, %v52
    %v55 = vmul.f32 %v49, %v53
    %v56 = vsub.f32 %v54, %v46
    %v57 = vsub.f32 %v55, %v47
    %v58 = vld [vmem:[#allocation5] sm:$0xff]
    %v59 = vld [vmem:[#allocation5 + $0x8] sm:$0xff]
    %v60 = vld [vmem:[#allocation5 + $0x10] sm:$0xff]
    %v61 = vld [vmem:[#allocation5 + $0x18] sm:$0xff]
    %v62 = vld [vmem:[#allocation5 + $0x20] sm:$0xff]
    %v63 = vld [vmem:[#allocation5 + $0x28] sm:$0xff]
    %v64 = vld [vmem:[#allocation5 + $0x30] sm:$0xff]
    %v65 = vld [vmem:[#allocation5 + $0x38] sm:$0xff]
    %vm66 = vcmask 261120
    %v68 = vsel %vm66, %v46, 0
    %v71 = vsel %vm66, %v47, 0
    %73 = vmatprep.subr.mxu0 0.0
    %74 = vmatpush1.msra.mxu0 %v62
    %75 = vmatprep.subr.mxu0 0.0
    %76 = vmatpush1.msra.mxu0 %v63
    %77 = vmatprep.subr.mxu0 0.0
    %78 = vmatpush1.msra.mxu0 %v64
    %79 = vmatprep.subr.mxu0 0.0
    %80 = vmatpush1.msra.mxu0 %v65
    %81 = vmatprep.subr.mxu0 0.0
    %82 = vmatpush1.msra.mxu0 0.0
    %83 = vmatprep.subr.mxu0 0.0
    %84 = vmatpush1.msra.mxu0 0.0
    %85 = vmatprep.subr.mxu0 0.0
    %86 = vmatpush1.msra.mxu0 0.0
    %87 = vmatprep.subr.mxu0 0.0
    %88 = vmatpush1.msra.mxu0 0.0
    %89 = vmatprep.subr.mxu0 0.0
    %90 = vmatpush1.msra.mxu0 0.0
    %91 = vmatprep.subr.mxu0 0.0
    %92 = vmatpush1.msra.mxu0 0.0
    %93 = vmatprep.subr.mxu0 0.0
    %94 = vmatpush1.msra.mxu0 0.0
    %95 = vmatprep.subr.mxu0 0.0
    %96 = vmatpush1.msra.mxu0 0.0
    %97 = vmatprep.subr.mxu0 0.0
    %98 = vmatpush1.msra.mxu0 0.0
    %99 = vmatprep.subr.mxu0 0.0
    %100 = vmatpush1.msra.mxu0 0.0
    %101 = vmatprep.subr.mxu0 0.0
    %102 = vmatpush1.msra.mxu0 0.0
    %103 = vmatprep.subr.mxu0 0.0
    %104 = vmatpush1.msra.mxu0 0.0
    %105 = vmatprep.subr.mxu0 0.0
    %106 = vmatpush1.msra.mxu0 0.0
    %107 = vmatprep.subr.mxu0 0.0
    %108 = vmatpush1.msra.mxu0 0.0
    %109 = vmatprep.subr.mxu0 0.0
    %110 = vmatpush1.msra.mxu0 0.0
    %111 = vmatprep.subr.mxu0 0.0
    %112 = vmatpush1.msra.mxu0 0.0
    %113 = vmatprep.subr.mxu0 0.0
    %114 = vmatpush1.msra.mxu0 0.0
    %115 = vmatprep.subr.mxu0 0.0
    %116 = vmatpush1.msra.mxu0 0.0
    %117 = vmatprep.subr.mxu0 0.0
    %118 = vmatpush1.msra.mxu0 0.0
    %119 = vmatprep.subr.mxu0 0.0
    %120 = vmatpush1.msra.mxu0 0.0
    %121 = vmatprep.subr.mxu0 0.0
    %122 = vmatpush1.msra.mxu0 0.0
    %123 = vmatprep.subr.mxu0 0.0
    %124 = vmatpush1.msra.mxu0 0.0
    %125 = vmatprep.subr.mxu0 0.0
    %126 = vmatpush1.msra.mxu0 0.0
    %127 = vmatprep.subr.mxu0 0.0
    %128 = vmatpush1.msra.mxu0 0.0
    %129 = vmatprep.subr.mxu0 0.0
    %130 = vmatpush1.msra.mxu0 0.0
    %131 = vmatprep.subr.mxu0 0.0
    %132 = vmatpush1.msra.mxu0 0.0
    %133 = vmatprep.subr.mxu0 0.0
    %134 = vmatpush1.msra.mxu0 0.0
    %135 = vmatprep.subr.mxu0 0.0
    %136 = vmatpush1.msra.mxu0 0.0
    %137 = vmatprep.mubr.f32.mxu0 0.0
    %138 = vmatmul.mubr.f32.gmra.mrb[0].mxu0 %v68
    %v139 = vpop.f32.mrb[0].mxu0
    %v140 = vadd.f32 0.0, %v139
    %v141 = vpop.f32.mrb[0].mxu0
    %142 = vmatprep.mubr.f32.mxu0 0.0
    %143 = vmatmul.mubr.f32.gmra.mrb[0].mxu0 %v71
    %v144 = vpop.f32.mrb[0].mxu0
    %v145 = vadd.f32 0.0, %v144
    %v146 = vpop.f32.mrb[0].mxu0
    %147 = vdwg.mxu0
    %v149 = vsel %vm66, 1.0, 0
    %151 = vmatprep.subr.mxu0 0.0
    %152 = vmatpush1.msra.mxu0 %v58
    %153 = vmatprep.subr.mxu0 0.0
    %154 = vmatpush1.msra.mxu0 %v59
    %155 = vmatprep.subr.mxu0 0.0
    %156 = vmatpush1.msra.mxu0 %v60
    %157 = vmatprep.subr.mxu0 0.0
    %158 = vmatpush1.msra.mxu0 %v61
    %159 = vmatprep.subr.mxu0 0.0
    %160 = vmatpush1.msra.mxu0 0.0
    %161 = vmatprep.subr.mxu0 0.0
    %162 = vmatpush1.msra.mxu0 0.0
    %163 = vmatprep.subr.mxu0 0.0
    %164 = vmatpush1.msra.mxu0 0.0
    %165 = vmatprep.subr.mxu0 0.0
    %166 = vmatpush1.msra.mxu0 0.0
    %167 = vmatprep.subr.mxu0 0.0
    %168 = vmatpush1.msra.mxu0 0.0
    %169 = vmatprep.subr.mxu0 0.0
    %170 = vmatpush1.msra.mxu0 0.0
    %171 = vmatprep.subr.mxu0 0.0
    %172 = vmatpush1.msra.mxu0 0.0
    %173 = vmatprep.subr.mxu0 0.0
    %174 = vmatpush1.msra.mxu0 0.0
    %175 = vmatprep.subr.mxu0 0.0
    %176 = vmatpush1.msra.mxu0 0.0
    %177 = vmatprep.subr.mxu0 0.0
    %178 = vmatpush1.msra.mxu0 0.0
    %179 = vmatprep.subr.mxu0 0.0
    %180 = vmatpush1.msra.mxu0 0.0
    %181 = vmatprep.subr.mxu0 0.0
    %182 = vmatpush1.msra.mxu0 0.0
    %183 = vmatprep.subr.mxu0 0.0
    %184 = vmatpush1.msra.mxu0 0.0
    %185 = vmatprep.subr.mxu0 0.0
    %186 = vmatpush1.msra.mxu0 0.0
    %187 = vmatprep.subr.mxu0 0.0
    %188 = vmatpush1.msra.mxu0 0.0
    %189 = vmatprep.subr.mxu0 0.0
    %190 = vmatpush1.msra.mxu0 0.0
    %191 = vmatprep.subr.mxu0 0.0
    %192 = vmatpush1.msra.mxu0 0.0
    %193 = vmatprep.subr.mxu0 0.0
    %194 = vmatpush1.msra.mxu0 0.0
    %195 = vmatprep.subr.mxu0 0.0
    %196 = vmatpush1.msra.mxu0 0.0
    %197 = vmatprep.subr.mxu0 0.0
    %198 = vmatpush1.msra.mxu0 0.0
    %199 = vmatprep.subr.mxu0 0.0
    %200 = vmatpush1.msra.mxu0 0.0
    %201 = vmatprep.subr.mxu0 0.0
    %202 = vmatpush1.msra.mxu0 0.0
    %203 = vmatprep.subr.mxu0 0.0
    %204 = vmatpush1.msra.mxu0 0.0
    %205 = vmatprep.subr.mxu0 0.0
    %206 = vmatpush1.msra.mxu0 0.0
    %207 = vmatprep.subr.mxu0 0.0
    %208 = vmatpush1.msra.mxu0 0.0
    %209 = vmatprep.subr.mxu0 0.0
    %210 = vmatpush1.msra.mxu0 0.0
    %211 = vmatprep.subr.mxu0 0.0
    %212 = vmatpush1.msra.mxu0 0.0
    %213 = vmatprep.subr.mxu0 0.0
    %214 = vmatpush1.msra.mxu0 0.0
    %215 = vmatprep.mubr.f32.mxu0 0.0
    %216 = vmatmul.mubr.f32.gmra.mrb[0].mxu0 %v149
    %v217 = vpop.f32.mrb[0].mxu0
    %v218 = vadd.f32 %v140, %v217
    %v219 = vpop.f32.mrb[0].mxu0
    %220 = vmatprep.mubr.f32.mxu0 0.0
    %221 = vmatmul.mubr.f32.gmra.mrb[0].mxu0 %v149
    %v222 = vpop.f32.mrb[0].mxu0
    %v223 = vadd.f32 %v145, %v222
    %v224 = vpop.f32.mrb[0].mxu0
    %225 = vdwg.mxu0
    %v226 = vld [vmem:[#allocation5 + $0x40] sm:$0xff]
    %v227 = vld [vmem:[#allocation5 + $0x48] sm:$0xff]
    %v228 = vld [vmem:[#allocation5 + $0x50] sm:$0xff]
    %v229 = vld [vmem:[#allocation5 + $0x58] sm:$0xff]
    %v231 = vsel %vm66, %v52, 0
    %v234 = vsel %vm66, %v53, 0
    %236 = vmatprep.subr.mxu0 0.0
    %237 = vmatpush1.msra.mxu0 %v226
    %238 = vmatprep.subr.mxu0 0.0
    %239 = vmatpush1.msra.mxu0 %v227
    %240 = vmatprep.subr.mxu0 0.0
    %241 = vmatpush1.msra.mxu0 %v228
    %242 = vmatprep.subr.mxu0 0.0
    %243 = vmatpush1.msra.mxu0 %v229
    %244 = vmatprep.subr.mxu0 0.0
    %245 = vmatpush1.msra.mxu0 0.0
    %246 = vmatprep.subr.mxu0 0.0
    %247 = vmatpush1.msra.mxu0 0.0
    %248 = vmatprep.subr.mxu0 0.0
    %249 = vmatpush1.msra.mxu0 0.0
    %250 = vmatprep.subr.mxu0 0.0
    %251 = vmatpush1.msra.mxu0 0.0
    %252 = vmatprep.subr.mxu0 0.0
    %253 = vmatpush1.msra.mxu0 0.0
    %254 = vmatprep.subr.mxu0 0.0
    %255 = vmatpush1.msra.mxu0 0.0
    %256 = vmatprep.subr.mxu0 0.0
    %257 = vmatpush1.msra.mxu0 0.0
    %258 = vmatprep.subr.mxu0 0.0
    %259 = vmatpush1.msra.mxu0 0.0
    %260 = vmatprep.subr.mxu0 0.0
    %261 = vmatpush1.msra.mxu0 0.0
    %262 = vmatprep.subr.mxu0 0.0
    %263 = vmatpush1.msra.mxu0 0.0
    %264 = vmatprep.subr.mxu0 0.0
    %265 = vmatpush1.msra.mxu0 0.0
    %266 = vmatprep.subr.mxu0 0.0
    %267 = vmatpush1.msra.mxu0 0.0
    %268 = vmatprep.subr.mxu0 0.0
    %269 = vmatpush1.msra.mxu0 0.0
    %270 = vmatprep.subr.mxu0 0.0
    %271 = vmatpush1.msra.mxu0 0.0
    %272 = vmatprep.subr.mxu0 0.0
    %273 = vmatpush1.msra.mxu0 0.0
    %274 = vmatprep.subr.mxu0 0.0
    %275 = vmatpush1.msra.mxu0 0.0
    %276 = vmatprep.subr.mxu0 0.0
    %277 = vmatpush1.msra.mxu0 0.0
    %278 = vmatprep.subr.mxu0 0.0
    %279 = vmatpush1.msra.mxu0 0.0
    %280 = vmatprep.subr.mxu0 0.0
    %281 = vmatpush1.msra.mxu0 0.0
    %282 = vmatprep.subr.mxu0 0.0
    %283 = vmatpush1.msra.mxu0 0.0
    %284 = vmatprep.subr.mxu0 0.0
    %285 = vmatpush1.msra.mxu0 0.0
    %286 = vmatprep.subr.mxu0 0.0
    %287 = vmatpush1.msra.mxu0 0.0
    %288 = vmatprep.subr.mxu0 0.0
    %289 = vmatpush1.msra.mxu0 0.0
    %290 = vmatprep.subr.mxu0 0.0
    %291 = vmatpush1.msra.mxu0 0.0
    %292 = vmatprep.subr.mxu0 0.0
    %293 = vmatpush1.msra.mxu0 0.0
    %294 = vmatprep.subr.mxu0 0.0
    %295 = vmatpush1.msra.mxu0 0.0
    %296 = vmatprep.subr.mxu0 0.0
    %297 = vmatpush1.msra.mxu0 0.0
    %298 = vmatprep.subr.mxu0 0.0
    %299 = vmatpush1.msra.mxu0 0.0
    %300 = vmatprep.mubr.f32.mxu0 0.0
    %301 = vmatmul.mubr.f32.gmra.mrb[0].mxu0 %v231
    %v302 = vpop.f32.mrb[0].mxu0
    %v303 = vadd.f32 0.0, %v302
    %v304 = vpop.f32.mrb[0].mxu0
    %305 = vmatprep.mubr.f32.mxu0 0.0
    %306 = vmatmul.mubr.f32.gmra.mrb[0].mxu0 %v234
    %v307 = vpop.f32.mrb[0].mxu0
    %v308 = vadd.f32 0.0, %v307
    %v309 = vpop.f32.mrb[0].mxu0
    %310 = vdwg.mxu0
    %v311 = vadd.f32 %v218, %v303
    %v312 = vadd.f32 %v223, %v308
    %v313 = vld [vmem:[#allocation5 + $0x60] sm:$0xff]
    %v314 = vld [vmem:[#allocation5 + $0x68] sm:$0xff]
    %v315 = vld [vmem:[#allocation5 + $0x70] sm:$0xff]
    %v316 = vld [vmem:[#allocation5 + $0x78] sm:$0xff]
    %v318 = vsel %vm66, %v56, 0
    %v321 = vsel %vm66, %v57, 0
    %323 = vmatprep.subr.mxu0 0.0
    %324 = vmatpush1.msra.mxu0 %v313
    %325 = vmatprep.subr.mxu0 0.0
    %326 = vmatpush1.msra.mxu0 %v314
    %327 = vmatprep.subr.mxu0 0.0
    %328 = vmatpush1.msra.mxu0 %v315
    %329 = vmatprep.subr.mxu0 0.0
    %330 = vmatpush1.msra.mxu0 %v316
    %331 = vmatprep.subr.mxu0 0.0
    %332 = vmatpush1.msra.mxu0 0.0
    %333 = vmatprep.subr.mxu0 0.0
    %334 = vmatpush1.msra.mxu0 0.0
    %335 = vmatprep.subr.mxu0 0.0
    %336 = vmatpush1.msra.mxu0 0.0
    %337 = vmatprep.subr.mxu0 0.0
    %338 = vmatpush1.msra.mxu0 0.0
    %339 = vmatprep.subr.mxu0 0.0
    %340 = vmatpush1.msra.mxu0 0.0
    %341 = vmatprep.subr.mxu0 0.0
    %342 = vmatpush1.msra.mxu0 0.0
    %343 = vmatprep.subr.mxu0 0.0
    %344 = vmatpush1.msra.mxu0 0.0
    %345 = vmatprep.subr.mxu0 0.0
    %346 = vmatpush1.msra.mxu0 0.0
    %347 = vmatprep.subr.mxu0 0.0
    %348 = vmatpush1.msra.mxu0 0.0
    %349 = vmatprep.subr.mxu0 0.0
    %350 = vmatpush1.msra.mxu0 0.0
    %351 = vmatprep.subr.mxu0 0.0
    %352 = vmatpush1.msra.mxu0 0.0
    %353 = vmatprep.subr.mxu0 0.0
    %354 = vmatpush1.msra.mxu0 0.0
    %355 = vmatprep.subr.mxu0 0.0
    %356 = vmatpush1.msra.mxu0 0.0
    %357 = vmatprep.subr.mxu0 0.0
    %358 = vmatpush1.msra.mxu0 0.0
    %359 = vmatprep.subr.mxu0 0.0
    %360 = vmatpush1.msra.mxu0 0.0
    %361 = vmatprep.subr.mxu0 0.0
    %362 = vmatpush1.msra.mxu0 0.0
    %363 = vmatprep.subr.mxu0 0.0
    %364 = vmatpush1.msra.mxu0 0.0
    %365 = vmatprep.subr.mxu0 0.0
    %366 = vmatpush1.msra.mxu0 0.0
    %367 = vmatprep.subr.mxu0 0.0
    %368 = vmatpush1.msra.mxu0 0.0
    %369 = vmatprep.subr.mxu0 0.0
    %370 = vmatpush1.msra.mxu0 0.0
    %371 = vmatprep.subr.mxu0 0.0
    %372 = vmatpush1.msra.mxu0 0.0
    %373 = vmatprep.subr.mxu0 0.0
    %374 = vmatpush1.msra.mxu0 0.0
    %375 = vmatprep.subr.mxu0 0.0
    %376 = vmatpush1.msra.mxu0 0.0
    %377 = vmatprep.subr.mxu0 0.0
    %378 = vmatpush1.msra.mxu0 0.0
    %379 = vmatprep.subr.mxu0 0.0
    %380 = vmatpush1.msra.mxu0 0.0
    %381 = vmatprep.subr.mxu0 0.0
    %382 = vmatpush1.msra.mxu0 0.0
    %383 = vmatprep.subr.mxu0 0.0
    %384 = vmatpush1.msra.mxu0 0.0
    %385 = vmatprep.subr.mxu0 0.0
    %386 = vmatpush1.msra.mxu0 0.0
    %387 = vmatprep.mubr.f32.mxu0 0.0
    %388 = vmatmul.mubr.f32.gmra.mrb[0].mxu0 %v318
    %v389 = vpop.f32.mrb[0].mxu0
    %v390 = vadd.f32 0.0, %v389
    %v391 = vpop.f32.mrb[0].mxu0
    %392 = vmatprep.mubr.f32.mxu0 0.0
    %393 = vmatmul.mubr.f32.gmra.mrb[0].mxu0 %v321
    %v394 = vpop.f32.mrb[0].mxu0
    %v395 = vadd.f32 0.0, %v394
    %v396 = vpop.f32.mrb[0].mxu0
    %397 = vdwg.mxu0
    %v398 = vadd.f32 %v311, %v390
    %v399 = vadd.f32 %v312, %v395
    %vm400 = vcmask 130048
    %401 = vst.msk [vmem:[#allocation7] sm:$0xff] %vm400, %v398
    %402 = vst.msk [vmem:[#allocation7 + $0x8] sm:$0xff] %vm400, %v399
    // Predicated region
    $region18: #{tpu_custom_call.1} parent=1 // pred_check
      _
    $region19: #{tpu_custom_call.1} parent=1 // pred_check_branch
      %404 = sbr.rel (0) target = $region21
    $region20: #{tpu_custom_call.1} parent=1 // pred_region
      %s406 = ssub.s32 256, 256
      %407 = vsyncadd [#allocation4], %s406
      %s408 = sshll.u32 [#allocation7], 4
      %s409 = int_to_ptr.vmem [resolvable:$true] %s408
      %414 = dma.vmem_to_hbm [thread:$0]  %s409, 256, %s2, [#allocation4], 128, 128, 8
    $region21: #{tpu_custom_call.1} parent=1 // pred_fallthru
      _
    // Predicated region
    $region22: #{tpu_custom_call.1} parent=1 // pred_check
      _
    $region23: #{tpu_custom_call.1} parent=1 // pred_check_branch
      %416 = sbr.rel (0) target = $region25
    $region24: #{tpu_custom_call.1} parent=1 // pred_region
      %417 = dma.done [#allocation4], 256
    $region25: #{tpu_custom_call.1} parent=1 // pred_fallthru
      _
    %418 = vsyncpa [#allocation3], 1
    %419 = vsyncpa [#allocation6], 1
    %420 = vsyncpa [#allocation4], 1

</llo_original>
